<compile_context>
chip_gen: v7x
topology: tpu7x:2x2x1
jax: 0.10.0
libtpu: 0.0.40
codegen_flags: <defaults>
</compile_context>

<pallas_src>
import math

import jax
import jax.numpy as jnp
from jax.experimental import pallas as pl
from jax.experimental.pallas import tpu as pltpu

TRIP_COLS = ['tod', 'road', 'road_prop', 'lng', 'lat', 'weekday', 'seq_i',
             'seconds', 'speed', 'acceleration', 'heading_angle', 'road_type',
             'lanes', 'direction']
NUM_FEATS = len(TRIP_COLS)  # 14

# Fixed ladder of row tiles (multiples of 16 -> safe for bf16 sublane packing).
_ROW_TILES = (2048, 1024, 512, 256, 128, 64, 32, 16)
# Below this many lane-dense rows (~0.9 MiB f32) skip Pallas entirely.
_MIN_PALLAS_ROWS = 256


def _pick_row_tile(m):
    """Largest fixed tile giving >= 4 grid steps (>= 2 per TC on v7x megacore);
    fall back to >= 2 steps, then the smallest tile."""
    for t in _ROW_TILES:
        if m >= 4 * t:
            return t
    for t in _ROW_TILES:
        if m >= 2 * t:
            return t
    return _ROW_TILES[-1]


# ----------------------------- Pallas kernel ------------------------------ #
def _denorm_kernel(x_ref, scale_ref, shift_ref, o_ref):
    # x_ref: (row_tile, LANE); scale_ref/shift_ref: (1, LANE) broadcast over rows.
    x = x_ref[...].astype(jnp.float32)
    o_ref[...] = (x * scale_ref[...] + shift_ref[...]).astype(o_ref.dtype)


def _denorm_pallas(x2d, scale2d, shift2d):
    """x2d: (M, LANE); scale2d/shift2d: (1, LANE) float32 -> (M, LANE)."""
    m, lane = x2d.shape
    row_tile = _pick_row_tile(m)
    grid = (pl.cdiv(m, row_tile),)  # partial last block is masked by Pallas

    # VMEM sized from the actual footprint: in+out double-buffered tiles plus
    # the resident (1, LANE) scale/shift rows, plus slack; floored at 16 MiB.
    blk_bytes = row_tile * lane * x2d.dtype.itemsize
    vmem_bytes = max(16 << 20, 4 * blk_bytes + 4 * lane * 4 + (2 << 20))

    return pl.pallas_call(
        _denorm_kernel,
        out_shape=jax.ShapeDtypeStruct((m, lane), x2d.dtype),
        grid_spec=pltpu.PrefetchScalarGridSpec(
            num_scalar_prefetch=0,
            grid=grid,
            in_specs=[
                pl.BlockSpec((row_tile, lane), lambda i: (i, 0)),
                # Constant block index -> kept resident, not re-DMA'd per step.
                pl.BlockSpec((1, lane), lambda i: (0, 0)),
                pl.BlockSpec((1, lane), lambda i: (0, 0)),
            ],
            out_specs=pl.BlockSpec((row_tile, lane), lambda i: (i, 0)),
        ),
        compiler_params=pltpu.CompilerParams(
            dimension_semantics=("parallel",),
            vmem_limit_bytes=int(vmem_bytes),
        ),
    )(x2d, scale2d, shift2d)


# --------------------------- jitted forward impl --------------------------- #
def _affine(x, scale, shift, out_dtype):
    return (x.astype(jnp.float32) * scale + shift).astype(out_dtype)


@jax.jit
def _denorm_forward(arr, scale_t, shift_t):
    """arr: feature-last array; scale_t/shift_t: (1, LANE) float32."""
    out_dtype = arr.dtype
    lane = scale_t.shape[-1]
    num_feats = arr.shape[-1]
    total = arr.size
    m = total // lane

    if m < _MIN_PALLAS_ROWS:
        # Tiny/small input: fused XLA elementwise is already at roofline.
        return _affine(arr, scale_t[0, :num_feats], shift_t[0, :num_feats],
                       out_dtype)

    x_flat = arr.reshape(-1)
    bulk = m * lane
    bulk_out = _denorm_pallas(
        x_flat[:bulk].reshape(m, lane), scale_t, shift_t).reshape(-1)

    if bulk == total:
        return bulk_out.reshape(arr.shape)

    # Ragged tail (< LANE elements). Use the overlapping final window starting
    # at total - lane: that offset is a multiple of num_feats (both total and
    # lane are), so the per-lane scale/shift phase is preserved.
    tail = total - bulk
    window = x_flat[total - lane:]                       # static slice, (lane,)
    window_out = _affine(window, scale_t[0], shift_t[0], out_dtype)
    out_flat = jnp.concatenate([bulk_out, window_out[lane - tail:]])
    return out_flat.reshape(arr.shape)


# ------------------------------ Module wrapper ----------------------------- #
class DenormalizerPallas:
    """JAX/Pallas equivalent of OpenTraj Denormalizer.

    `stat` is a dict {col_name: {'mean':, 'std':, 'min':, 'max':}} (replaces
    the pandas `stat.loc['std', name]` access pattern).
    """

    def __init__(self, stat, feat_cols, feat_names=None, norm_type='zscore'):
        self.stat = stat
        self.feat_cols = list(feat_cols)
        self.feat_names = (list(feat_names) if feat_names is not None
                           else [TRIP_COLS[c] for c in feat_cols])
        self.norm_type = norm_type
        self._param_cache = {}

    def _tiled_scale_shift(self, select_cols, num_feats):
        key = (frozenset(select_cols), num_feats)
        hit = self._param_cache.get(key)
        if hit is not None:
            return hit
        scale = [1.0] * num_feats
        shift = [0.0] * num_feats
        for col, name in zip(self.feat_cols, self.feat_names):
            if col in select_cols:
                s = self.stat[name]
                if self.norm_type == 'zscore':
                    scale[col] = float(s['std'])
                    shift[col] = float(s['mean'])
                elif self.norm_type == 'minmax':
                    # ((x+1)/2)*(max-min)+min == x*(max-min)/2 + (max+min)/2
                    scale[col] = (float(s['max']) - float(s['min'])) / 2.0
                    shift[col] = (float(s['max']) + float(s['min'])) / 2.0
                else:
                    raise NotImplementedError(self.norm_type)
        lane = num_feats * 128 // math.gcd(num_feats, 128)   # lcm(F, 128)
        reps = lane // num_feats
        scale_t = jnp.tile(jnp.asarray(scale, jnp.float32), reps).reshape(1, lane)
        shift_t = jnp.tile(jnp.asarray(shift, jnp.float32), reps).reshape(1, lane)
        self._param_cache[key] = (scale_t, shift_t)
        return scale_t, shift_t

    def forward(self, select_cols, arr):
        arr = jnp.asarray(arr)
        # Preserve floating dtypes (bf16 stays bf16); promote ints to f32.
        if not jnp.issubdtype(arr.dtype, jnp.floating):
            arr = arr.astype(jnp.float32)
        num_feats = arr.shape[-1]
        scale_t, shift_t = self._tiled_scale_shift(set(select_cols), num_feats)
        return _denorm_forward(arr, scale_t, shift_t)

    __call__ = forward


# ---------------------------------- Demo ----------------------------------- #
if __name__ == "__main__":
    key = jax.random.PRNGKey(0)

    # Deterministic synthetic stats (would normally come from a DataFrame).
    stat = {
        name: {'mean': 0.1 * (i + 1), 'std': 1.0 + 0.05 * i,
               'min': -1.0 - 0.1 * i, 'max': 1.0 + 0.2 * i}
        for i, name in enumerate(TRIP_COLS)
    }

    feat_cols = [3, 4, 8, 10]          # lng, lat, speed, heading_angle
    select_cols = [3, 4, 8]            # denormalize only these

    # zscore, exact lane multiple: (4, 4096, 14) = 229,376 elems = 256 rows
    # of 896 -> Pallas path, row_tile=64, grid=4.
    denorm = DenormalizerPallas(stat, feat_cols, norm_type='zscore')
    arr = jax.random.normal(key, (4, 4096, NUM_FEATS), dtype=jnp.float32)
    out = jax.block_until_ready(denorm(select_cols, arr))

    ref = arr
    for col, name in zip(denorm.feat_cols, denorm.feat_names):
        if col in select_cols:
            new_col = arr[..., col] * stat[name]['std'] + stat[name]['mean']
            ref = ref.at[..., col].set(new_col)
    assert out.shape == arr.shape and out.dtype == arr.dtype
    assert jnp.allclose(out, ref, atol=1e-5, rtol=1e-5)

    # minmax + ragged tail: (5, 4100, 14) = 287,000 elems -> 320 bulk rows
    # + 280-element tail handled by the overlapping-window path.
    denorm_mm = DenormalizerPallas(stat, feat_cols, norm_type='minmax')
    arr2 = jax.random.normal(jax.random.PRNGKey(1), (5, 4100, NUM_FEATS),
                             dtype=jnp.float32)
    out2 = jax.block_until_ready(denorm_mm(select_cols, arr2))

    ref2 = arr2
    for col, name in zip(denorm_mm.feat_cols, denorm_mm.feat_names):
        if col in select_cols:
            c = (arr2[..., col] + 1.0) / 2.0
            c = c * (stat[name]['max'] - stat[name]['min']) + stat[name]['min']
            ref2 = ref2.at[..., col].set(c)
    assert out2.shape == arr2.shape and out2.dtype == arr2.dtype
    assert jnp.allclose(out2, ref2, atol=1e-5, rtol=1e-5)

    print("KERNEL_OK")
</pallas_src>

<mosaic_0001>
module attributes {stable_mosaic.version = 11 : i64} {
  func.func @_denorm_kernel(%arg0: i32, %arg1: memref<64x896xf32, #tpu.memory_space<vmem>>, %arg2: memref<1x896xf32, #tpu.memory_space<vmem>>, %arg3: memref<1x896xf32, #tpu.memory_space<vmem>>, %arg4: memref<64x896xf32, #tpu.memory_space<vmem>>) attributes {dimension_semantics = [#tpu.dimension_semantics<parallel>], iteration_bounds = array<i64: 4>, scalar_prefetch = 0 : i64, scratch_operands = 0 : i64, tpu.core_type = #tpu.core_type<tc>, window_params = [{transform_indices = @transform_0, window_bounds = array<i64: 64, 896>}, {pipeline_mode = #tpu.pipeline_mode<synchronous>, transform_indices = @transform_1, window_bounds = array<i64: 1, 896>}, {pipeline_mode = #tpu.pipeline_mode<synchronous>, transform_indices = @transform_2, window_bounds = array<i64: 1, 896>}, {transform_indices = @transform_3, window_bounds = array<i64: 64, 896>}]} {
    %c0 = arith.constant 0 : index
    %c0_0 = arith.constant 0 : index
    %0 = vector.load %arg1[%c0, %c0_0] : memref<64x896xf32, #tpu.memory_space<vmem>>, vector<64x896xf32>
    %c0_1 = arith.constant 0 : index
    %c0_2 = arith.constant 0 : index
    %1 = vector.load %arg2[%c0_1, %c0_2] : memref<1x896xf32, #tpu.memory_space<vmem>>, vector<1x896xf32>
    %2 = vector.broadcast %1 : vector<1x896xf32> to vector<64x896xf32>
    %3 = arith.mulf %0, %2 : vector<64x896xf32>
    %c0_3 = arith.constant 0 : index
    %c0_4 = arith.constant 0 : index
    %4 = vector.load %arg3[%c0_3, %c0_4] : memref<1x896xf32, #tpu.memory_space<vmem>>, vector<1x896xf32>
    %5 = vector.broadcast %4 : vector<1x896xf32> to vector<64x896xf32>
    %6 = arith.addf %3, %5 : vector<64x896xf32>
    %c0_5 = arith.constant 0 : index
    %c0_6 = arith.constant 0 : index
    %7 = vector.load %arg4[%c0_5, %c0_6] : memref<64x896xf32, #tpu.memory_space<vmem>>, vector<64x896xf32>
    tpu.vector_store %arg4[%c0_5, %c0_6], %6 {strides = array<i32>} : memref<64x896xf32, #tpu.memory_space<vmem>>, vector<64x896xf32>,
    return
  }
  func.func @transform_0(%arg0: i32) -> (i32, i32) {
    %c0_i32 = arith.constant 0 : i32
    %c0_i32_0 = arith.constant 0 : i32
    return %arg0, %c0_i32 : i32, i32
  }
  func.func @transform_1(%arg0: i32) -> (i32, i32) {
    %c0_i32 = arith.constant 0 : i32
    %c0_i32_0 = arith.constant 0 : i32
    %c0_i32_1 = arith.constant 0 : i32
    return %c0_i32, %c0_i32_0 : i32, i32
  }
  func.func @transform_2(%arg0: i32) -> (i32, i32) {
    %c0_i32 = arith.constant 0 : i32
    %c0_i32_0 = arith.constant 0 : i32
    %c0_i32_1 = arith.constant 0 : i32
    return %c0_i32, %c0_i32_0 : i32, i32
  }
  func.func @transform_3(%arg0: i32) -> (i32, i32) {
    %c0_i32 = arith.constant 0 : i32
    %c0_i32_0 = arith.constant 0 : i32
    return %arg0, %c0_i32 : i32, i32
  }
}

</mosaic_0001>

<llo_original>
// kernel: _denorm_forward.1
$region0: #{_denorm_forward.1}
  #allocation0 [shape = 'u32[]', space=smem, size = 0x4, offset = 0x4, fixed_abs, tag = 'smem constant byte address 0x4 - core index']
  #allocation1 [shape = 'u32[144,128]{1,0:T(1,128)}', space=vmem, size = 0x12000, scoped, tag = 'internal scratch']
  %s0 = inlined_call_operand.vmem [shape: f32[256,896], index: 0, kind: input, shape index: {}]
  %s1 = inlined_call_operand.vmem [shape: f32[1,896], index: 1, kind: input, shape index: {}]
  %s2 = inlined_call_operand.vmem [shape: f32[1,896], index: 2, kind: input, shape index: {}]
  %s3 = inlined_call_operand.vmem [shape: f32[256,896], index: 3, kind: output, shape index: {}]
  %s4 = sld [smem:[#allocation0]]
  $region45: #{_denorm_forward.1} parent=0
    _
  %s6 = ssub.s32 1, %s4
  %s7 = scalar_select 0, %s6, %s4
  loop: start=0, step=1, limit=6
  $region2: #{_denorm_forward.1} parent=0 // loop_pre_header
    _
  $region3: #{_denorm_forward.1} parent=0 // loop_header
    %s9 = sphi 0, %s13
    %p10 = scmp.ge.s32.totalorder %s9, 6
    %s19 = sphi 0, %s21
    %s22 = sphi 0, %s19
    %s23 = sphi 0, %s22
    %s39 = sphi 0, %s23
    %s43 = sphi 0, %s43
    %s45 = sphi 0, %s43
    %s46 = sphi 0, %s45
    %s60 = sphi 0, %s46
    %s64 = sphi 0, %s64
    %s66 = sphi 0, %s64
    %s67 = sphi 0, %s66
    %s81 = sphi 0, %s67
    %s87 = sphi 0, %s89
    %s90 = sphi 0, %s87
    %s91 = sphi 0, %s90
    %s107 = sphi 0, %s91
  $region4: #{_denorm_forward.1} parent=0 // loop_header_branch
    %12 = sbr.rel (%p10) target = $region8
  $region5: #{_denorm_forward.1} parent=0 // loop_body
    %s14 = ssub.s32 %s9, 1
    %s15 = ssub.s32 %s9, 2
    %s16 = sadd.s32 %s9, 1
    %s17 = ssub.s32 %s9, %s16
    %p18 = scmp.eq.s32.totalorder %s17, 0
    %s20 = sadd.s32 %s19, 1
    %s21 = scalar_select %p18, %s19, %s20
    %p24 = pneg %p18
    %p25 = scmp.eq.s32.totalorder %s9, 3
    %p26 = por %p24, %p25
    %p27 = scmp.ne.s32.totalorder %s19, %s22
    %p28 = scmp.eq.s32.totalorder %s9, 0
    %p29 = por %p27, %p28
    %p30 = scmp.ne.s32.totalorder %s19, %s22
    %p31 = scmp.eq.s32.totalorder %s14, 3
    %p32 = por %p30, %p31
    %p33 = scmp.ne.s32.totalorder %s22, %s23
    %p34 = scmp.eq.s32.totalorder %s14, 0
    %p35 = por %p33, %p34
    %p36 = scmp.ne.s32.totalorder %s22, %s23
    %p37 = scmp.eq.s32.totalorder %s15, 3
    %p38 = por %p36, %p37
    %p40 = scmp.ne.s32.totalorder %s23, %s39
    %p41 = scmp.eq.s32.totalorder %s15, 0
    %p42 = por %p40, %p41
    %s44 = sadd.s32 %s43, 1
    %p47 = scmp.eq.s32.totalorder %s9, 3
    %p48 = scmp.ne.s32.totalorder %s43, %s45
    %p49 = scmp.eq.s32.totalorder %s9, 0
    %p50 = por %p48, %p49
    %p51 = scmp.ne.s32.totalorder %s43, %s45
    %p52 = scmp.eq.s32.totalorder %s14, 3
    %p53 = por %p51, %p52
    %p54 = scmp.ne.s32.totalorder %s45, %s46
    %p55 = scmp.eq.s32.totalorder %s14, 0
    %p56 = por %p54, %p55
    %p57 = scmp.ne.s32.totalorder %s45, %s46
    %p58 = scmp.eq.s32.totalorder %s15, 3
    %p59 = por %p57, %p58
    %p61 = scmp.ne.s32.totalorder %s46, %s60
    %p62 = scmp.eq.s32.totalorder %s15, 0
    %p63 = por %p61, %p62
    %s65 = sadd.s32 %s64, 1
    %p68 = scmp.eq.s32.totalorder %s9, 3
    %p69 = scmp.ne.s32.totalorder %s64, %s66
    %p70 = scmp.eq.s32.totalorder %s9, 0
    %p71 = por %p69, %p70
    %p72 = scmp.ne.s32.totalorder %s64, %s66
    %p73 = scmp.eq.s32.totalorder %s14, 3
    %p74 = por %p72, %p73
    %p75 = scmp.ne.s32.totalorder %s66, %s67
    %p76 = scmp.eq.s32.totalorder %s14, 0
    %p77 = por %p75, %p76
    %p78 = scmp.ne.s32.totalorder %s66, %s67
    %p79 = scmp.eq.s32.totalorder %s15, 3
    %p80 = por %p78, %p79
    %p82 = scmp.ne.s32.totalorder %s67, %s81
    %p83 = scmp.eq.s32.totalorder %s15, 0
    %p84 = por %p82, %p83
    %s85 = ssub.s32 %s9, %s16
    %p86 = scmp.eq.s32.totalorder %s85, 0
    %s88 = sadd.s32 %s87, 1
    %s89 = scalar_select %p86, %s87, %s88
    %p92 = pneg %p86
    %p93 = scmp.eq.s32.totalorder %s9, 3
    %p94 = por %p92, %p93
    %p95 = scmp.ne.s32.totalorder %s87, %s90
    %p96 = scmp.eq.s32.totalorder %s9, 0
    %p97 = por %p95, %p96
    %p98 = scmp.ne.s32.totalorder %s87, %s90
    %p99 = scmp.eq.s32.totalorder %s14, 3
    %p100 = por %p98, %p99
    %p101 = scmp.ne.s32.totalorder %s90, %s91
    %p102 = scmp.eq.s32.totalorder %s14, 0
    %p103 = por %p101, %p102
    %p104 = scmp.ne.s32.totalorder %s90, %s91
    %p105 = scmp.eq.s32.totalorder %s15, 3
    %p106 = por %p104, %p105
    %p108 = scmp.ne.s32.totalorder %s91, %s107
    %p109 = scmp.eq.s32.totalorder %s15, 0
    %p110 = por %p108, %p109
    %p111 = scmp.le.s32.totalorder 1, %s9
    %p112 = scmp.lt.s32.totalorder %s9, 5
    %p113 = pnand %p111, %p112
    %p114 = pneg %p113
    // Predicated region
    $region9: #{_denorm_forward.1} parent=5 // pred_check
      _
    $region10: #{_denorm_forward.1} parent=5 // pred_check_branch
      %116 = sbr.rel (%p113) target = $region12
    $region11: #{_denorm_forward.1} parent=5 // pred_region
      %s117 = ssub.s32 %s9, 1
      // Predicated region
      $region13: #{_denorm_forward.1} parent=11 // pred_check
        %p118 = pneg %p56
      $region14: #{_denorm_forward.1} parent=11 // pred_check_branch
        %120 = sbr.rel (%p118) target = $region16
      $region15: #{_denorm_forward.1} parent=11 // pred_region
        _
      $region16: #{_denorm_forward.1} parent=11 // pred_fallthru
        _
      // Predicated region
      $region17: #{_denorm_forward.1} parent=11 // pred_check
        %p121 = pneg %p77
      $region18: #{_denorm_forward.1} parent=11 // pred_check_branch
        %123 = sbr.rel (%p121) target = $region20
      $region19: #{_denorm_forward.1} parent=11 // pred_region
        _
      $region20: #{_denorm_forward.1} parent=11 // pred_fallthru
        _
    $region12: #{_denorm_forward.1} parent=5 // pred_fallthru
      _
    %p124 = scmp.lt.s32.totalorder %s9, 4
    // Predicated region
    $region21: #{_denorm_forward.1} parent=5 // pred_check
      %p125 = pneg %p124
    $region22: #{_denorm_forward.1} parent=5 // pred_check_branch
      %127 = sbr.rel (%p125) target = $region24
    $region23: #{_denorm_forward.1} parent=5 // pred_region
      // Predicated region
      $region25: #{_denorm_forward.1} parent=23 // pred_check
        %p128 = pneg %p29
      $region26: #{_denorm_forward.1} parent=23 // pred_check_branch
        %130 = sbr.rel (%p128) target = $region28
      $region27: #{_denorm_forward.1} parent=23 // pred_region
        %s131 = smul.u32 8, %s9
        %p132 = scmp.lt.s32.totalorder %s131, 31
        %s133 = scalar_select %p132, %s131, 31
        %s134 = smul.addr %s133, 7
        %s135 = smul.addr %s134, 8
        %s136 = scalar_lea.vmem %s0, %s135
        %s137 = smul.u32 8, %s9
      $region28: #{_denorm_forward.1} parent=23 // pred_fallthru
        _
    $region24: #{_denorm_forward.1} parent=5 // pred_fallthru
      _
    %p138 = scmp.le.s32.totalorder 1, %s9
    %p139 = scmp.lt.s32.totalorder %s9, 5
    %p140 = pnand %p138, %p139
    %p141 = pneg %p140
    // Predicated region
    $region29: #{_denorm_forward.1} parent=5 // pred_check
      _
    $region30: #{_denorm_forward.1} parent=5 // pred_check_branch
      %143 = sbr.rel (%p140) target = $region32
    $region31: #{_denorm_forward.1} parent=5 // pred_region
      %s144 = ssub.s32 %s9, 1
      %s145 = smul.u32 8, %s14
      %p146 = scmp.lt.s32.totalorder %s145, 31
      %s147 = scalar_select %p146, %s145, 31
      %s148 = smul.addr %s147, 7
      %s149 = smul.addr %s148, 8
      %s150 = scalar_lea.vmem %s0, %s149
      %p151 = pneg %p35
      %p152 = pneg %p32
      %p153 = pneg %p56
      %p154 = pneg %p53
      %p155 = pneg %p77
      %p156 = pneg %p74
      %p157 = pneg %p103
      %p158 = pneg %p100
      %s159 = smul.u32 8, %s14
      %p160 = scmp.lt.s32.totalorder %s159, 31
      %s161 = scalar_select %p160, %s159, 31
      %s162 = smul.addr %s161, 7
      %s163 = smul.addr %s162, 8
      %s164 = scalar_lea.vmem %s3, %s163
      %s165 = smul.u32 8, %s14
      %p166 = scmp.lt.s32.totalorder %s165, 31
      %s167 = scalar_select %p166, %s165, 31
      %s168 = smul.addr %s167, 7
      %s169 = smul.addr %s168, 8
      %s170 = scalar_lea.vmem %s0, %s169
      %s171 = smul.u32 8, %s14
      %s172 = smul.u32 8, %s14
      %p173 = scmp.lt.s32.totalorder %s172, 31
      %s174 = scalar_select %p173, %s172, 31
      %s175 = smul.addr %s174, 7
      %s176 = smul.addr %s175, 8
      %s177 = scalar_lea.vmem %s3, %s176
      %s178 = smul.u32 8, %s14
      %v179 = vld [vmem:[%s170] sm:$0xff]
      %v180 = vld [vmem:[%s170 + $0x8] sm:$0xff]
      %v181 = vld [vmem:[%s170 + $0x10] sm:$0xff]
      %v182 = vld [vmem:[%s170 + $0x18] sm:$0xff]
      %v183 = vld [vmem:[%s170 + $0x20] sm:$0xff]
      %v184 = vld [vmem:[%s170 + $0x28] sm:$0xff]
      %v185 = vld [vmem:[%s170 + $0x30] sm:$0xff]
      %v186 = vld [vmem:[%s170 + $0x38] sm:$0xff]
      %v187 = vld [vmem:[%s170 + $0x40] sm:$0xff]
      %v188 = vld [vmem:[%s170 + $0x48] sm:$0xff]
      %v189 = vld [vmem:[%s170 + $0x50] sm:$0xff]
      %v190 = vld [vmem:[%s170 + $0x58] sm:$0xff]
      %v191 = vld [vmem:[%s170 + $0x60] sm:$0xff]
      %v192 = vld [vmem:[%s170 + $0x68] sm:$0xff]
      %v193 = vld [vmem:[%s170 + $0x70] sm:$0xff]
      %v194 = vld [vmem:[%s170 + $0x78] sm:$0xff]
      %v195 = vld [vmem:[%s170 + $0x80] sm:$0xff]
      %v196 = vld [vmem:[%s170 + $0x88] sm:$0xff]
      %v197 = vld [vmem:[%s170 + $0x90] sm:$0xff]
      %v198 = vld [vmem:[%s170 + $0x98] sm:$0xff]
      %v199 = vld [vmem:[%s170 + $0xa0] sm:$0xff]
      %v200 = vld [vmem:[%s170 + $0xa8] sm:$0xff]
      %v201 = vld [vmem:[%s170 + $0xb0] sm:$0xff]
      %v202 = vld [vmem:[%s170 + $0xb8] sm:$0xff]
      %v203 = vld [vmem:[%s170 + $0xc0] sm:$0xff]
      %v204 = vld [vmem:[%s170 + $0xc8] sm:$0xff]
      %v205 = vld [vmem:[%s170 + $0xd0] sm:$0xff]
      %v206 = vld [vmem:[%s170 + $0xd8] sm:$0xff]
      %v207 = vld [vmem:[%s170 + $0xe0] sm:$0xff]
      %v208 = vld [vmem:[%s170 + $0xe8] sm:$0xff]
      %v209 = vld [vmem:[%s170 + $0xf0] sm:$0xff]
      %v210 = vld [vmem:[%s170 + $0xf8] sm:$0xff]
      %v211 = vld [vmem:[%s170 + $0x100] sm:$0xff]
      %v212 = vld [vmem:[%s170 + $0x108] sm:$0xff]
      %v213 = vld [vmem:[%s170 + $0x110] sm:$0xff]
      %v214 = vld [vmem:[%s170 + $0x118] sm:$0xff]
      %v215 = vld [vmem:[%s170 + $0x120] sm:$0xff]
      %v216 = vld [vmem:[%s170 + $0x128] sm:$0xff]
      %v217 = vld [vmem:[%s170 + $0x130] sm:$0xff]
      %v218 = vld [vmem:[%s170 + $0x138] sm:$0xff]
      %v219 = vld [vmem:[%s170 + $0x140] sm:$0xff]
      %v220 = vld [vmem:[%s170 + $0x148] sm:$0xff]
      %v221 = vld [vmem:[%s170 + $0x150] sm:$0xff]
      %v222 = vld [vmem:[%s170 + $0x158] sm:$0xff]
      %v223 = vld [vmem:[%s170 + $0x160] sm:$0xff]
      %v224 = vld [vmem:[%s170 + $0x168] sm:$0xff]
      %v225 = vld [vmem:[%s170 + $0x170] sm:$0xff]
      %v226 = vld [vmem:[%s170 + $0x178] sm:$0xff]
      %v227 = vld [vmem:[%s170 + $0x180] sm:$0xff]
      %v228 = vld [vmem:[%s170 + $0x188] sm:$0xff]
      %v229 = vld [vmem:[%s170 + $0x190] sm:$0xff]
      %v230 = vld [vmem:[%s170 + $0x198] sm:$0xff]
      %v231 = vld [vmem:[%s170 + $0x1a0] sm:$0xff]
      %v232 = vld [vmem:[%s170 + $0x1a8] sm:$0xff]
      %v233 = vld [vmem:[%s170 + $0x1b0] sm:$0xff]
      %v234 = vld [vmem:[%s170 + $0x1b8] sm:$0xff]
      %v235 = vld [vmem:[%s1] sm:$0xff]
      %v237 = vlaneseq
      %v238 = vshrl.u32 %v237, 7
      %v239 = vsub.s32 0, %v238
      %v240 = vrot.slane %v235, %v239
      %v241 = vlaneseq
      %v242 = vshrl.u32 %v241, 7
      %v243 = vsub.s32 1, %v242
      %v244 = vrot.slane %v235, %v243
      %v245 = vlaneseq
      %v246 = vshrl.u32 %v245, 7
      %v247 = vsub.s32 2, %v246
      %v248 = vrot.slane %v235, %v247
      %v249 = vlaneseq
      %v250 = vshrl.u32 %v249, 7
      %v251 = vsub.s32 3, %v250
      %v252 = vrot.slane %v235, %v251
      %v253 = vlaneseq
      %v254 = vshrl.u32 %v253, 7
      %v255 = vsub.s32 4, %v254
      %v256 = vrot.slane %v235, %v255
      %v257 = vlaneseq
      %v258 = vshrl.u32 %v257, 7
      %v259 = vsub.s32 5, %v258
      %v260 = vrot.slane %v235, %v259
      %v261 = vlaneseq
      %v262 = vshrl.u32 %v261, 7
      %v263 = vsub.s32 6, %v262
      %v264 = vrot.slane %v235, %v263
      %v272 = vmul.f32 %v179, %v240
      %v273 = vmul.f32 %v180, %v244
      %v274 = vmul.f32 %v181, %v248
      %v275 = vmul.f32 %v182, %v252
      %v276 = vmul.f32 %v183, %v256
      %v277 = vmul.f32 %v184, %v260
      %v278 = vmul.f32 %v185, %v264
      %v279 = vmul.f32 %v186, %v240
      %v280 = vmul.f32 %v187, %v244
      %v281 = vmul.f32 %v188, %v248
      %v282 = vmul.f32 %v189, %v252
      %v283 = vmul.f32 %v190, %v256
      %v284 = vmul.f32 %v191, %v260
      %v285 = vmul.f32 %v192, %v264
      %v286 = vmul.f32 %v193, %v240
      %v287 = vmul.f32 %v194, %v244
      %v288 = vmul.f32 %v195, %v248
      %v289 = vmul.f32 %v196, %v252
      %v290 = vmul.f32 %v197, %v256
      %v291 = vmul.f32 %v198, %v260
      %v292 = vmul.f32 %v199, %v264
      %v293 = vmul.f32 %v200, %v240
      %v294 = vmul.f32 %v201, %v244
      %v295 = vmul.f32 %v202, %v248
      %v296 = vmul.f32 %v203, %v252
      %v297 = vmul.f32 %v204, %v256
      %v298 = vmul.f32 %v205, %v260
      %v299 = vmul.f32 %v206, %v264
      %v300 = vmul.f32 %v207, %v240
      %v301 = vmul.f32 %v208, %v244
      %v302 = vmul.f32 %v209, %v248
      %v303 = vmul.f32 %v210, %v252
      %v304 = vmul.f32 %v211, %v256
      %v305 = vmul.f32 %v212, %v260
      %v306 = vmul.f32 %v213, %v264
      %v307 = vmul.f32 %v214, %v240
      %v308 = vmul.f32 %v215, %v244
      %v309 = vmul.f32 %v216, %v248
      %v310 = vmul.f32 %v217, %v252
      %v311 = vmul.f32 %v218, %v256
      %v312 = vmul.f32 %v219, %v260
      %v313 = vmul.f32 %v220, %v264
      %v314 = vmul.f32 %v221, %v240
      %v315 = vmul.f32 %v222, %v244
      %v316 = vmul.f32 %v223, %v248
      %v317 = vmul.f32 %v224, %v252
      %v318 = vmul.f32 %v225, %v256
      %v319 = vmul.f32 %v226, %v260
      %v320 = vmul.f32 %v227, %v264
      %v321 = vmul.f32 %v228, %v240
      %v322 = vmul.f32 %v229, %v244
      %v323 = vmul.f32 %v230, %v248
      %v324 = vmul.f32 %v231, %v252
      %v325 = vmul.f32 %v232, %v256
      %v326 = vmul.f32 %v233, %v260
      %v327 = vmul.f32 %v234, %v264
      %v328 = vld [vmem:[%s2] sm:$0xff]
      %v330 = vlaneseq
      %v331 = vshrl.u32 %v330, 7
      %v332 = vsub.s32 0, %v331
      %v333 = vrot.slane %v328, %v332
      %v334 = vlaneseq
      %v335 = vshrl.u32 %v334, 7
      %v336 = vsub.s32 1, %v335
      %v337 = vrot.slane %v328, %v336
      %v338 = vlaneseq
      %v339 = vshrl.u32 %v338, 7
      %v340 = vsub.s32 2, %v339
      %v341 = vrot.slane %v328, %v340
      %v342 = vlaneseq
      %v343 = vshrl.u32 %v342, 7
      %v344 = vsub.s32 3, %v343
      %v345 = vrot.slane %v328, %v344
      %v346 = vlaneseq
      %v347 = vshrl.u32 %v346, 7
      %v348 = vsub.s32 4, %v347
      %v349 = vrot.slane %v328, %v348
      %v350 = vlaneseq
      %v351 = vshrl.u32 %v350, 7
      %v352 = vsub.s32 5, %v351
      %v353 = vrot.slane %v328, %v352
      %v354 = vlaneseq
      %v355 = vshrl.u32 %v354, 7
      %v356 = vsub.s32 6, %v355
      %v357 = vrot.slane %v328, %v356
      %v365 = vadd.f32 %v272, %v333
      %v366 = vadd.f32 %v273, %v337
      %v367 = vadd.f32 %v274, %v341
      %v368 = vadd.f32 %v275, %v345
      %v369 = vadd.f32 %v276, %v349
      %v370 = vadd.f32 %v277, %v353
      %v371 = vadd.f32 %v278, %v357
      %v372 = vadd.f32 %v279, %v333
      %v373 = vadd.f32 %v280, %v337
      %v374 = vadd.f32 %v281, %v341
      %v375 = vadd.f32 %v282, %v345
      %v376 = vadd.f32 %v283, %v349
      %v377 = vadd.f32 %v284, %v353
      %v378 = vadd.f32 %v285, %v357
      %v379 = vadd.f32 %v286, %v333
      %v380 = vadd.f32 %v287, %v337
      %v381 = vadd.f32 %v288, %v341
      %v382 = vadd.f32 %v289, %v345
      %v383 = vadd.f32 %v290, %v349
      %v384 = vadd.f32 %v291, %v353
      %v385 = vadd.f32 %v292, %v357
      %v386 = vadd.f32 %v293, %v333
      %v387 = vadd.f32 %v294, %v337
      %v388 = vadd.f32 %v295, %v341
      %v389 = vadd.f32 %v296, %v345
      %v390 = vadd.f32 %v297, %v349
      %v391 = vadd.f32 %v298, %v353
      %v392 = vadd.f32 %v299, %v357
      %v393 = vadd.f32 %v300, %v333
      %v394 = vadd.f32 %v301, %v337
      %v395 = vadd.f32 %v302, %v341
      %v396 = vadd.f32 %v303, %v345
      %v397 = vadd.f32 %v304, %v349
      %v398 = vadd.f32 %v305, %v353
      %v399 = vadd.f32 %v306, %v357
      %v400 = vadd.f32 %v307, %v333
      %v401 = vadd.f32 %v308, %v337
      %v402 = vadd.f32 %v309, %v341
      %v403 = vadd.f32 %v310, %v345
      %v404 = vadd.f32 %v311, %v349
      %v405 = vadd.f32 %v312, %v353
      %v406 = vadd.f32 %v313, %v357
      %v407 = vadd.f32 %v314, %v333
      %v408 = vadd.f32 %v315, %v337
      %v409 = vadd.f32 %v316, %v341
      %v410 = vadd.f32 %v317, %v345
      %v411 = vadd.f32 %v318, %v349
      %v412 = vadd.f32 %v319, %v353
      %v413 = vadd.f32 %v320, %v357
      %v414 = vadd.f32 %v321, %v333
      %v415 = vadd.f32 %v322, %v337
      %v416 = vadd.f32 %v323, %v341
      %v417 = vadd.f32 %v324, %v345
      %v418 = vadd.f32 %v325, %v349
      %v419 = vadd.f32 %v326, %v353
      %v420 = vadd.f32 %v327, %v357
      %421 = vst [vmem:[%s177] sm:$0xff] %v365
      %422 = vst [vmem:[%s177 + $0x8] sm:$0xff] %v366
      %423 = vst [vmem:[%s177 + $0x10] sm:$0xff] %v367
      %424 = vst [vmem:[%s177 + $0x18] sm:$0xff] %v368
      %425 = vst [vmem:[%s177 + $0x20] sm:$0xff] %v369
      %426 = vst [vmem:[%s177 + $0x28] sm:$0xff] %v370
      %427 = vst [vmem:[%s177 + $0x30] sm:$0xff] %v371
      %428 = vst [vmem:[%s177 + $0x38] sm:$0xff] %v372
      %429 = vst [vmem:[%s177 + $0x40] sm:$0xff] %v373
      %430 = vst [vmem:[%s177 + $0x48] sm:$0xff] %v374
      %431 = vst [vmem:[%s177 + $0x50] sm:$0xff] %v375
      %432 = vst [vmem:[%s177 + $0x58] sm:$0xff] %v376
      %433 = vst [vmem:[%s177 + $0x60] sm:$0xff] %v377
      %434 = vst [vmem:[%s177 + $0x68] sm:$0xff] %v378
      %435 = vst [vmem:[%s177 + $0x70] sm:$0xff] %v379
      %436 = vst [vmem:[%s177 + $0x78] sm:$0xff] %v380
      %437 = vst [vmem:[%s177 + $0x80] sm:$0xff] %v381
      %438 = vst [vmem:[%s177 + $0x88] sm:$0xff] %v382
      %439 = vst [vmem:[%s177 + $0x90] sm:$0xff] %v383
      %440 = vst [vmem:[%s177 + $0x98] sm:$0xff] %v384
      %441 = vst [vmem:[%s177 + $0xa0] sm:$0xff] %v385
      %442 = vst [vmem:[%s177 + $0xa8] sm:$0xff] %v386
      %443 = vst [vmem:[%s177 + $0xb0] sm:$0xff] %v387
      %444 = vst [vmem:[%s177 + $0xb8] sm:$0xff] %v388
      %445 = vst [vmem:[%s177 + $0xc0] sm:$0xff] %v389
      %446 = vst [vmem:[%s177 + $0xc8] sm:$0xff] %v390
      %447 = vst [vmem:[%s177 + $0xd0] sm:$0xff] %v391
      %448 = vst [vmem:[%s177 + $0xd8] sm:$0xff] %v392
      %449 = vst [vmem:[%s177 + $0xe0] sm:$0xff] %v393
      %450 = vst [vmem:[%s177 + $0xe8] sm:$0xff] %v394
      %451 = vst [vmem:[%s177 + $0xf0] sm:$0xff] %v395
      %452 = vst [vmem:[%s177 + $0xf8] sm:$0xff] %v396
      %453 = vst [vmem:[%s177 + $0x100] sm:$0xff] %v397
      %454 = vst [vmem:[%s177 + $0x108] sm:$0xff] %v398
      %455 = vst [vmem:[%s177 + $0x110] sm:$0xff] %v399
      %456 = vst [vmem:[%s177 + $0x118] sm:$0xff] %v400
      %457 = vst [vmem:[%s177 + $0x120] sm:$0xff] %v401
      %458 = vst [vmem:[%s177 + $0x128] sm:$0xff] %v402
      %459 = vst [vmem:[%s177 + $0x130] sm:$0xff] %v403
      %460 = vst [vmem:[%s177 + $0x138] sm:$0xff] %v404
      %461 = vst [vmem:[%s177 + $0x140] sm:$0xff] %v405
      %462 = vst [vmem:[%s177 + $0x148] sm:$0xff] %v406
      %463 = vst [vmem:[%s177 + $0x150] sm:$0xff] %v407
      %464 = vst [vmem:[%s177 + $0x158] sm:$0xff] %v408
      %465 = vst [vmem:[%s177 + $0x160] sm:$0xff] %v409
      %466 = vst [vmem:[%s177 + $0x168] sm:$0xff] %v410
      %467 = vst [vmem:[%s177 + $0x170] sm:$0xff] %v411
      %468 = vst [vmem:[%s177 + $0x178] sm:$0xff] %v412
      %469 = vst [vmem:[%s177 + $0x180] sm:$0xff] %v413
      %470 = vst [vmem:[%s177 + $0x188] sm:$0xff] %v414
      %471 = vst [vmem:[%s177 + $0x190] sm:$0xff] %v415
      %472 = vst [vmem:[%s177 + $0x198] sm:$0xff] %v416
      %473 = vst [vmem:[%s177 + $0x1a0] sm:$0xff] %v417
      %474 = vst [vmem:[%s177 + $0x1a8] sm:$0xff] %v418
      %475 = vst [vmem:[%s177 + $0x1b0] sm:$0xff] %v419
      %476 = vst [vmem:[%s177 + $0x1b8] sm:$0xff] %v420
      %s477 = smul.u32 8, %s14
      %p478 = scmp.lt.s32.totalorder %s477, 31
      %s479 = scalar_select %p478, %s477, 31
      %s480 = smul.addr %s479, 7
      %s481 = smul.addr %s480, 8
      %s482 = scalar_lea.vmem %s3, %s481
      // Predicated region
      $region33: #{_denorm_forward.1} parent=31 // pred_check
        %p483 = pneg %p100
      $region34: #{_denorm_forward.1} parent=31 // pred_check_branch
        %485 = sbr.rel (%p483) target = $region36
      $region35: #{_denorm_forward.1} parent=31 // pred_region
        %s486 = smul.u32 8, %s14
      $region36: #{_denorm_forward.1} parent=31 // pred_fallthru
        _
    $region32: #{_denorm_forward.1} parent=5 // pred_fallthru
      _
    %p487 = scmp.le.s32.totalorder 2, %s9
    // Predicated region
    $region37: #{_denorm_forward.1} parent=5 // pred_check
      %p488 = pneg %p487
    $region38: #{_denorm_forward.1} parent=5 // pred_check_branch
      %490 = sbr.rel (%p488) target = $region40
    $region39: #{_denorm_forward.1} parent=5 // pred_region
      %s491 = ssub.s32 %s9, 2
      // Predicated region
      $region41: #{_denorm_forward.1} parent=39 // pred_check
        %p492 = pneg %p106
      $region42: #{_denorm_forward.1} parent=39 // pred_check_branch
        %494 = sbr.rel (%p492) target = $region44
      $region43: #{_denorm_forward.1} parent=39 // pred_region
        %s495 = smul.u32 8, %s15
        %p496 = scmp.lt.s32.totalorder %s495, 31
        %s497 = scalar_select %p496, %s495, 31
        %s498 = smul.addr %s497, 7
        %s499 = smul.addr %s498, 8
        %s500 = scalar_lea.vmem %s3, %s499
      $region44: #{_denorm_forward.1} parent=39 // pred_fallthru
        _
    $region40: #{_denorm_forward.1} parent=5 // pred_fallthru
      _
  $region6: #{_denorm_forward.1} parent=0 // loop_footer
    %s13 = sadd.s32 1, %s9
  $region7: #{_denorm_forward.1} parent=0 // loop_footer_branch
    %8 = sbr.rel target = $region3
  $region8: #{_denorm_forward.1} parent=0 // loop_exit
    _

</llo_original>
